<compile_context>
chip_gen: v6e
topology: v6e:2x2x1
jax: 0.10.0
libtpu: 0.0.40
codegen_flags: <defaults>
</compile_context>

<pallas_src>
import jax
import jax.numpy as jnp
from jax.experimental import pallas as pl
from jax.experimental.pallas import tpu as pltpu


def _round_up(x, m):
    return (x + m - 1) // m * m


def _make_ce_kernel(n_rows, tile_n):
    """Builds the per-tile kernel; n_rows / tile_n are static Python ints."""

    def kernel(logits_ref, tgt_ref, out_ref):
        # (tile_n, C) native dtype -> f32 math in-kernel (v5e has no bf16 VPU/EUP)
        x = logits_ref[...].astype(jnp.float32)
        t = tgt_ref[...]                                   # (tile_n, 1) int32

        # numerically stable log-softmax over the class axis
        m = jnp.max(x, axis=-1, keepdims=True)             # (tile_n, 1)
        z = x - m                                          # (tile_n, C)
        lse = jnp.log(jnp.sum(jnp.exp(z), axis=-1, keepdims=True))

        # gather the target-class shifted logit via a one-hot select
        col = jax.lax.broadcasted_iota(jnp.int32, x.shape, 1)
        tgt_logit = jnp.sum(jnp.where(col == t, z, 0.0), axis=-1, keepdims=True)

        row_loss = lse - tgt_logit                         # (tile_n, 1) f32

        # mask rows past N in the last (partial) tile -- their block data is
        # unspecified, so zero them with a select before reducing.
        row = (pl.program_id(0) * tile_n
               + jax.lax.broadcasted_iota(jnp.int32, (tile_n, 1), 0))
        row_loss = jnp.where(row < n_rows, row_loss, 0.0)

        partial = jnp.sum(row_loss)                        # scalar f32

        # lane-dense (8,128) output block: partial sum at [0,0], zeros elsewhere
        sub = jax.lax.broadcasted_iota(jnp.int32, (8, 128), 0)
        lane = jax.lax.broadcasted_iota(jnp.int32, (8, 128), 1)
        out_ref[...] = jnp.where((sub == 0) & (lane == 0), partial, 0.0)

    return kernel


def bce_loss(fake_outputs, real_target, *, tile_n=None):
    """Mean-reduced softmax cross entropy.

    fake_outputs: (N, C) float logits (f32 or bf16 -- kept in native dtype)
    real_target:  (N,)   integer class indices
    returns: scalar float32 loss
    """
    n, c = fake_outputs.shape
    dtype = fake_outputs.dtype
    itemsize = jnp.dtype(dtype).itemsize
    c_lanes = _round_up(c, 128)          # physical lane width of one row in VMEM

    if tile_n is None:
        # VMEM bytes per row: 2x double-buffered native-dtype input block plus
        # ~4 f32 temporaries (x, z, exp(z), one-hot product).
        per_row = 2 * c_lanes * itemsize + 4 * c_lanes * 4
        vmem_budget = 40 * 1024 * 1024          # safe under v7x's 64 MiB/core
        tile_cap = (vmem_budget // per_row) // 8 * 8
        # ~2 MiB logits blocks amortize the ~0.35 us per-grid-step overhead
        # while keeping DMAs long enough to saturate HBM.
        tile_target = ((2 * 1024 * 1024) // (c_lanes * itemsize)) // 8 * 8
        tile_n = min(tile_cap, tile_target)
    tile_n = max(8, min(_round_up(max(tile_n, 1), 8), _round_up(n, 8)))
    num_tiles = pl.cdiv(n, tile_n)

    targets = real_target.astype(jnp.int32).reshape(n, 1)

    partials = pl.pallas_call(
        _make_ce_kernel(n, tile_n),
        out_shape=jax.ShapeDtypeStruct((num_tiles * 8, 128), jnp.float32),
        grid=(num_tiles,),
        in_specs=[
            # last block dim == C (full array dim) -> no class padding needed
            pl.BlockSpec((tile_n, c), lambda i: (i, 0)),
            pl.BlockSpec((tile_n, 1), lambda i: (i, 0)),
        ],
        out_specs=pl.BlockSpec((8, 128), lambda i: (i, 0)),
        compiler_params=pltpu.CompilerParams(
            dimension_semantics=("parallel",),   # independent row tiles (megacore)
            vmem_limit_bytes=48 * 1024 * 1024,
        ),
        cost_estimate=pl.CostEstimate(
            flops=5 * n * c,
            transcendentals=n * c,
            bytes_accessed=n * c * itemsize + n * 4 + num_tiles * 8 * 128 * 4,
        ),
    )(fake_outputs, targets)

    # tiny wrapper reduction over num_tiles * 1024 values; 1/N precomputed.
    return jnp.sum(partials) * jnp.float32(1.0 / n)


if __name__ == "__main__":
    key = jax.random.PRNGKey(0)
    k1, k2, k3, k4, k5, k6 = jax.random.split(key, 6)

    # Case 1: f32 logits, tiny aligned batch (tight numerical check).
    N, C = 8, 32
    logits_f32 = jax.random.normal(k1, (N, C), dtype=jnp.float32)
    targets = jax.random.randint(k2, (N,), 0, C, dtype=jnp.int32)

    loss = bce_loss(logits_f32, targets)
    jax.block_until_ready(loss)

    logz = jax.nn.log_softmax(logits_f32, axis=-1)
    ref = -jnp.mean(logz[jnp.arange(N), targets])
    assert jnp.allclose(loss, ref, atol=1e-5, rtol=1e-5), (loss, ref)

    # Case 2: bf16 logits, N/C not tile-aligned; tile_n=8 forces a 2-step grid
    # with an in-kernel masked row tail and a ragged (C=40) class axis.
    N2, C2 = 13, 40
    logits_bf16 = jax.random.normal(k3, (N2, C2), dtype=jnp.float32).astype(jnp.bfloat16)
    targets2 = jax.random.randint(k4, (N2,), 0, C2, dtype=jnp.int32)

    loss2 = bce_loss(logits_bf16, targets2, tile_n=8)
    jax.block_until_ready(loss2)

    logz2 = jax.nn.log_softmax(logits_bf16.astype(jnp.float32), axis=-1)
    ref2 = -jnp.mean(logz2[jnp.arange(N2), targets2])
    assert jnp.allclose(loss2, ref2, atol=1e-4, rtol=1e-4), (loss2, ref2)

    # Case 3: auto tile sizing (large-ish tile, 8-row overhang masked in-kernel).
    N3, C3 = 1000, 200
    logits3 = jax.random.normal(k5, (N3, C3), dtype=jnp.float32)
    targets3 = jax.random.randint(k6, (N3,), 0, C3, dtype=jnp.int32)

    loss3 = bce_loss(logits3, targets3)
    jax.block_until_ready(loss3)

    logz3 = jax.nn.log_softmax(logits3, axis=-1)
    ref3 = -jnp.mean(logz3[jnp.arange(N3), targets3])
    assert jnp.allclose(loss3, ref3, atol=1e-4, rtol=1e-4), (loss3, ref3)

    print("KERNEL_OK")
</pallas_src>

<mosaic_0001>
module attributes {stable_mosaic.version = 11 : i64} {
  func.func @kernel(%arg0: i32, %arg1: memref<8x32xf32, #tpu.memory_space<vmem>>, %arg2: memref<8x1xi32, #tpu.memory_space<vmem>>, %arg3: memref<8x128xf32, #tpu.memory_space<vmem>>) attributes {dimension_semantics = [#tpu.dimension_semantics<parallel>], iteration_bounds = array<i64: 1>, scalar_prefetch = 0 : i64, scratch_operands = 0 : i64, tpu.core_type = #tpu.core_type<tc>, window_params = [{transform_indices = @transform_0, window_bounds = array<i64: 8, 32>}, {transform_indices = @transform_1, window_bounds = array<i64: 8, 1>}, {transform_indices = @transform_2, window_bounds = array<i64: 8, 128>}]} {
    %c0 = arith.constant 0 : index
    %c0_0 = arith.constant 0 : index
    %0 = vector.load %arg1[%c0, %c0_0] : memref<8x32xf32, #tpu.memory_space<vmem>>, vector<8x32xf32>
    %c0_1 = arith.constant 0 : index
    %c0_2 = arith.constant 0 : index
    %1 = vector.load %arg2[%c0_1, %c0_2] : memref<8x1xi32, #tpu.memory_space<vmem>>, vector<8x1xi32>
    %cst = arith.constant dense<0xFF800000> : vector<8xf32>
    %2 = vector.multi_reduction <maximumf>, %0, %cst [1] : vector<8x32xf32> to vector<8xf32>
    %3 = vector.shape_cast %2 : vector<8xf32> to vector<8x1xf32>
    %4 = vector.broadcast %3 : vector<8x1xf32> to vector<8x32xf32>
    %5 = arith.subf %0, %4 : vector<8x32xf32>
    %6 = math.exp %5 : vector<8x32xf32>
    %cst_3 = arith.constant dense<0.000000e+00> : vector<8xf32>
    %7 = vector.multi_reduction <add>, %6, %cst_3 [1] : vector<8x32xf32> to vector<8xf32>
    %8 = vector.shape_cast %7 : vector<8xf32> to vector<8x1xf32>
    %9 = math.log %8 : vector<8x1xf32>
    %10 = tpu.iota {dimensions = array<i32: 1>} : vector<8x32xi32>
    %11 = vector.broadcast %1 : vector<8x1xi32> to vector<8x32xi32>
    %12 = arith.cmpi eq, %10, %11 : vector<8x32xi32>
    %cst_4 = arith.constant 0.000000e+00 : f32
    %13 = vector.broadcast %cst_4 : f32 to vector<8x32xf32>
    %14 = arith.select %12, %5, %13 : vector<8x32xi1>, vector<8x32xf32>
    %cst_5 = arith.constant dense<0.000000e+00> : vector<8xf32>
    %15 = vector.multi_reduction <add>, %14, %cst_5 [1] : vector<8x32xf32> to vector<8xf32>
    %16 = vector.shape_cast %15 : vector<8xf32> to vector<8x1xf32>
    %17 = arith.subf %9, %16 : vector<8x1xf32>
    %c8_i32 = arith.constant 8 : i32
    %18 = arith.muli %arg0, %c8_i32 : i32
    %19 = tpu.iota {dimensions = array<i32: 0>} : vector<8x1xi32>
    %20 = vector.broadcast %18 : i32 to vector<8x1xi32>
    %21 = arith.addi %20, %19 : vector<8x1xi32>
    %c8_i32_6 = arith.constant 8 : i32
    %22 = vector.broadcast %c8_i32_6 : i32 to vector<8x1xi32>
    %23 = arith.cmpi slt, %21, %22 : vector<8x1xi32>
    %cst_7 = arith.constant 0.000000e+00 : f32
    %24 = vector.broadcast %cst_7 : f32 to vector<8x1xf32>
    %25 = arith.select %23, %17, %24 : vector<8x1xi1>, vector<8x1xf32>
    %26 = vector.shape_cast %25 : vector<8x1xf32> to vector<1x8x1xf32>
    %cst_8 = arith.constant dense<0.000000e+00> : vector<1xf32>
    %27 = vector.multi_reduction <add>, %26, %cst_8 [1, 2] : vector<1x8x1xf32> to vector<1xf32>
    %28 = vector.shape_cast %27 : vector<1xf32> to vector<1x1x1xf32>
    %29 = vector.extract %28[0, 0, 0] : f32 from vector<1x1x1xf32>
    %30 = tpu.iota {dimensions = array<i32: 0>} : vector<8x128xi32>
    %31 = tpu.iota {dimensions = array<i32: 1>} : vector<8x128xi32>
    %c0_i32 = arith.constant 0 : i32
    %32 = vector.broadcast %c0_i32 : i32 to vector<8x128xi32>
    %33 = arith.cmpi eq, %30, %32 : vector<8x128xi32>
    %c0_i32_9 = arith.constant 0 : i32
    %34 = vector.broadcast %c0_i32_9 : i32 to vector<8x128xi32>
    %35 = arith.cmpi eq, %31, %34 : vector<8x128xi32>
    %36 = arith.andi %33, %35 : vector<8x128xi1>
    %cst_10 = arith.constant 0.000000e+00 : f32
    %37 = vector.broadcast %29 : f32 to vector<8x128xf32>
    %38 = vector.broadcast %cst_10 : f32 to vector<8x128xf32>
    %39 = arith.select %36, %37, %38 : vector<8x128xi1>, vector<8x128xf32>
    %c0_11 = arith.constant 0 : index
    %c0_12 = arith.constant 0 : index
    %40 = vector.load %arg3[%c0_11, %c0_12] : memref<8x128xf32, #tpu.memory_space<vmem>>, vector<8x128xf32>
    tpu.vector_store %arg3[%c0_11, %c0_12], %39 {strides = array<i32>} : memref<8x128xf32, #tpu.memory_space<vmem>>, vector<8x128xf32>,
    return
  }
  func.func @transform_0(%arg0: i32) -> (i32, i32) {
    %c0_i32 = arith.constant 0 : i32
    %c0_i32_0 = arith.constant 0 : i32
    return %arg0, %c0_i32 : i32, i32
  }
  func.func @transform_1(%arg0: i32) -> (i32, i32) {
    %c0_i32 = arith.constant 0 : i32
    %c0_i32_0 = arith.constant 0 : i32
    return %arg0, %c0_i32 : i32, i32
  }
  func.func @transform_2(%arg0: i32) -> (i32, i32) {
    %c0_i32 = arith.constant 0 : i32
    %c0_i32_0 = arith.constant 0 : i32
    return %arg0, %c0_i32 : i32, i32
  }
}

</mosaic_0001>

<llo_original>
// kernel: tpu_custom_call.1
$region0: #{tpu_custom_call.1}
  #allocation0 [shape = 'u32[]', space=smem, size = 0x4, offset = 0x4, fixed_abs, tag = 'smem constant byte address 0x4 - core index']
  #allocation1 [shape = 'u32[144,128]{1,0:T(1,128)}', space=vmem, size = 0x12000, scoped, tag = 'internal scratch']
  %s0 = inlined_call_operand.vmem [shape: f32[8,32], index: 0, kind: input, shape index: {}]
  %s1 = inlined_call_operand.vmem [shape: s32[8,1], index: 1, kind: input, shape index: {}]
  %s2 = inlined_call_operand.hbm [shape: f32[8,128], index: 2, kind: output, shape index: {}]
  %s3 = sld [smem:[#allocation0]]
  $region18: #{tpu_custom_call.1} parent=0
    _
  %s5 = ssub.s32 1, %s3
  %s6 = scalar_select 0, %s5, %s3
  $region1: #{tpu_custom_call.1} parent=0
    #allocation2 [shape = 'u8[4096]{0}', space=vmem, size = 0x1000, scoped, tag = 'output window, operand 0, single buffered']
    #allocation3 [shape = 's32[1]{0}', space=sflag, size = 0x4, scoped, tag = 'scoped memory for tpu_custom_call.1']
    %7 = vsyncpa [#allocation3], 0
    // Predicated region
    $region2: #{tpu_custom_call.1} parent=1 // pred_check
      _
    $region3: #{tpu_custom_call.1} parent=1 // pred_check_branch
      %9 = sbr.rel (0) target = $region5
    $region4: #{tpu_custom_call.1} parent=1 // pred_region
      _
    $region5: #{tpu_custom_call.1} parent=1 // pred_fallthru
      _
    // Predicated region
    $region6: #{tpu_custom_call.1} parent=1 // pred_check
      _
    $region7: #{tpu_custom_call.1} parent=1 // pred_check_branch
      %11 = sbr.rel (0) target = $region9
    $region8: #{tpu_custom_call.1} parent=1 // pred_region
      _
    $region9: #{tpu_custom_call.1} parent=1 // pred_fallthru
      _
    %v12 = vld [vmem:[%s0] sm:$0xff]
    %v13 = vld [vmem:[%s1] sm:$0xff]
    %vm14 = vcmask 261120
    %v15 = vsel %vm14, %v12, -inf
    %16 = vmax.xlane.f32.xlu0 %v15
    %v17 = vpop.xlane.xlu0 %16
    %v18 = vsub.f32 %v12, %v17
    %v19 = vmul.f32 %v18, 1.442695
    %v20 = vpow.pop %v19
    %v21 = vsel %vm14, %v20, 0.0
    %22 = vadd.xlane.f32.xlu0 %v21
    %v23 = vpop.xlane.xlu0 %22
    %v24 = vlog2.pop %v23
    %v25 = vmul.f32 %v24, 0.6931472
    %v26 = vlaneseq
    %v27 = vand.u32 %v26, 127
    %28 = vset.pattern.permute.xlu0 0
    %29 = vperm.xlu0 %28, %v13
    %v30 = vpop.permute.xlu0 %29
    %vm31 = vcmp.eq.s32.totalorder %v27, %v30
    %v32 = vsel %vm31, %v18, 0.0
    %v33 = vsel %vm14, %v32, 0.0
    %34 = vadd.xlane.f32.xlu0 %v33
    %v35 = vpop.xlane.xlu0 %34
    %v36 = vsub.f32 %v25, %v35
    %s37 = smul.u32 0, 8
    %v38 = vlaneseq
    %v39 = vshrl.u32 %v38, 7
    %v40 = vstv %s37
    %v41 = vadd.s32 %v40, %v39
    %vm42 = vcmp.lt.s32.totalorder %v41, 8
    %v43 = vsel %vm42, %v36, 0.0
    %vm44 = vcmask 7168
    %v45 = vsel %vm44, %v43, 0.0
    %46 = vadd.xlane.f32.xlu0 %v45
    %v47 = vpop.xlane.xlu0 %46
    %v48 = vrot.slane %v47, 4
    %v49 = vadd.f32 %v47, %v48
    %v50 = vrot.slane %v49, 2
    %v51 = vadd.f32 %v49, %v50
    %v52 = vrot.slane %v51, 1
    %v53 = vadd.f32 %v51, %v52
    %s54 = vtos %v53
    %vm55 = vcmp.eq.s32.totalorder %v39, 0
    %vm56 = vcmp.eq.s32.totalorder %v27, 0
    %vm57 = vmand %vm55, %vm56
    %v58 = vstv %s54
    %v59 = vsel %vm57, %v58, 0.0
    %60 = vst [vmem:[#allocation2] sm:$0xff] %v59
    // Predicated region
    $region10: #{tpu_custom_call.1} parent=1 // pred_check
      _
    $region11: #{tpu_custom_call.1} parent=1 // pred_check_branch
      %62 = sbr.rel (0) target = $region13
    $region12: #{tpu_custom_call.1} parent=1 // pred_region
      %s64 = ssub.s32 128, 128
      %65 = vsyncadd [#allocation3], %s64
      %s67 = sshll.u32 [#allocation2], 4
      %s68 = int_to_ptr.vmem [resolvable:$true] %s67
      %70 = dma.vmem_to_hbm [thread:$0]  %s68, 128, %s2, [#allocation3]
    $region13: #{tpu_custom_call.1} parent=1 // pred_fallthru
      _
    // Predicated region
    $region14: #{tpu_custom_call.1} parent=1 // pred_check
      _
    $region15: #{tpu_custom_call.1} parent=1 // pred_check_branch
      %72 = sbr.rel (0) target = $region17
    $region16: #{tpu_custom_call.1} parent=1 // pred_region
      %73 = dma.done [#allocation3], 128
    $region17: #{tpu_custom_call.1} parent=1 // pred_fallthru
      _
    %74 = vsyncpa [#allocation3], 1

</llo_original>
